<compile_context>
chip_gen: v7x
topology: tpu7x:2x2x1
jax: 0.10.0
libtpu: 0.0.40
codegen_flags: <defaults>
</compile_context>

<pallas_src>
import jax
import jax.numpy as jnp
from jax.experimental import pallas as pl
from jax.experimental.pallas import tpu as pltpu


def _round_up(x, m):
    return ((x + m - 1) // m) * m


def _round_down(x, m):
    return (x // m) * m


def stm_kernel(g_ref, v_ref, wq_ref, bq_ref, out_ref):
    # g_ref:   (1, TL, D)  gene-embedding tile (source dtype; cast in-kernel)
    # v_ref:   (1, 1, D)   f32  V[b] = fused[b] @ W_w  (per-step block)
    # wq_ref:  (D, D)      bf16 gene2query weight, (in, out) layout
    # bq_ref:  (1, D)      f32  gene2query bias
    # out_ref: (1, 1, TL)  f32  predicted values for this (b, L-tile)
    g = g_ref[0].astype(jnp.bfloat16)                                    # (TL, D)
    s = jnp.dot(g, wq_ref[...], preferred_element_type=jnp.float32)     # (TL, D) f32
    x = s + bq_ref[...]
    # sigmoid(x) == 0.5 * (tanh(0.5 * x) + 1): single EUP push per element.
    q = 0.5 * (jnp.tanh(0.5 * x) + 1.0)                                  # (TL, D) f32

    vb = v_ref[0]                                                        # (1, D) f32
    # Lane-dense output row: contract D of (1, D) with D of (TL, D) -> (1, TL).
    out_ref[0] = jax.lax.dot_general(
        vb, q,
        dimension_numbers=(((1,), (1,)), ((), ())),
        preferred_element_type=jnp.float32,
    )


def stm_predictor_forward(cell_emb, gene_embs, cell_size_emb, params, tl=4096):
    """Pallas implementation of STMPredictor.forward (cls / InnerProductDecoder)."""
    B, Lp1, D = gene_embs.shape
    L = Lp1 - 1

    # ---- tiny glue (plain JAX): slicing / concat / algebraic collapse -------
    cls = cell_emb[:, 0, :]                                           # (B, D)
    fused = jnp.concatenate([cls, cell_size_emb[:, 0, :]], axis=1)    # (B, Din)
    # pred = q @ (Ww^T @ fused)  ==>  V = fused @ Ww   (B, D), tiny precompute.
    v = jnp.dot(fused, params["W_w"]).astype(jnp.float32)             # (B, D)
    v = v.reshape(B, 1, D)                                            # (B, 1, D)

    wq_t = params["gene2query_w"].T.astype(jnp.bfloat16)              # (D, D) (in,out)
    bq = params["gene2query_b"].reshape(1, D).astype(jnp.float32)     # (1, D)

    # ---- tiling (no input padding / copies) ----------------------------------
    tl = _round_up(max(tl, 128), 128)
    gene_itemsize = jnp.dtype(gene_embs.dtype).itemsize
    # Cap so 2 double-buffered gene tiles stay under ~24 MiB (safe on v5e/v7x).
    tl_vmem_cap = max(128, _round_down((24 << 20) // (2 * D * gene_itemsize), 128))
    tl_eff = min(tl, _round_up(Lp1, 128), tl_vmem_cap)
    n_l = pl.cdiv(Lp1, tl_eff)
    L_pad = n_l * tl_eff          # padded output length (kernel-owned array only)

    # Explicit scoped-VMEM budget (double-buffered gene tiles + residents + slack).
    need = (2 * tl_eff * D * gene_itemsize      # gene tiles (double-buffered)
            + 2 * D * D * 2                     # Wq bf16 (double-buffered)
            + 2 * tl_eff * 4                    # output tiles
            + (2 << 20))                        # bias / V / misc slack
    vmem_limit = int(min(64 << 20, max(need + (4 << 20), 16 << 20)))

    out = pl.pallas_call(
        stm_kernel,
        out_shape=jax.ShapeDtypeStruct((B, 1, L_pad), jnp.float32),
        grid_spec=pltpu.PrefetchScalarGridSpec(
            num_scalar_prefetch=0,
            grid=(B, n_l),
            in_specs=[
                pl.BlockSpec((1, tl_eff, D), lambda b, l: (b, l, 0)),  # gene tile
                pl.BlockSpec((1, 1, D), lambda b, l: (b, 0, 0)),       # V row b
                pl.BlockSpec((D, D), lambda b, l: (0, 0)),             # Wq (resident)
                pl.BlockSpec((1, D), lambda b, l: (0, 0)),             # bq (resident)
            ],
            out_specs=pl.BlockSpec((1, 1, tl_eff), lambda b, l: (b, 0, l)),
        ),
        compiler_params=pltpu.CompilerParams(
            dimension_semantics=("parallel", "parallel"),
            vmem_limit_bytes=vmem_limit,
        ),
    )(gene_embs, v, wq_t, bq)

    # Column 0 is the cls token row (computed but unused); columns >= Lp1 are
    # padded tail lanes. Both are sliced off.
    return out.reshape(B, L_pad)[:, 1:Lp1]                            # (B, L)


def reference_forward(cell_emb, gene_embs, cell_size_emb, params):
    """Pure-JAX f32 reference mirroring the PyTorch module."""
    cls = cell_emb[:, 0, :]
    fused = jnp.concatenate([cls, cell_size_emb[:, 0, :]], axis=1)    # (B, Din)
    genes = gene_embs[:, 1:, :]                                       # (B, L, D)
    q = jax.nn.sigmoid(
        jnp.einsum("bld,od->blo", genes, params["gene2query_w"])
        + params["gene2query_b"]
    )
    y = jnp.einsum("bld,od->blo", q, params["W_w"])                   # (B, L, Din)
    return jnp.einsum("blo,bo->bl", y, fused)                         # (B, L)


def init_params(key, d_model, d_in):
    """Deterministic, nn.Linear-style uniform init."""
    k1, k2, k3 = jax.random.split(key, 3)
    lim_q = 1.0 / jnp.sqrt(d_model)
    return {
        # nn.Linear(d_model, d_model): weight (out, in), bias (out,)
        "gene2query_w": jax.random.uniform(
            k1, (d_model, d_model), jnp.float32, -lim_q, lim_q),
        "gene2query_b": jax.random.uniform(
            k2, (d_model,), jnp.float32, -lim_q, lim_q),
        # nn.Linear(d_model, d_in, bias=False): weight (d_in, d_model)
        "W_w": jax.random.uniform(
            k3, (d_in, d_model), jnp.float32, -lim_q, lim_q),
    }


if __name__ == "__main__":
    # Small shapes consistent with the module defaults (d_model scaled down).
    B = 2
    D = 128          # d_model
    L = 128          # number of genes (after dropping the leading cls token)
    DIN = 2 * D      # d_in = d_model + d_model (use_cell_size=True, no image)

    key = jax.random.PRNGKey(0)
    kc, kg, ks, kp = jax.random.split(key, 4)
    cell_emb = jax.random.normal(kc, (B, L + 1, D), jnp.float32)
    gene_embs = jax.random.normal(kg, (B, L + 1, D), jnp.float32)
    cell_size_emb = jax.random.normal(ks, (B, L + 1, D), jnp.float32)
    params = init_params(kp, D, DIN)

    pred = stm_predictor_forward(cell_emb, gene_embs, cell_size_emb, params)
    pred = jax.block_until_ready(pred)

    ref = reference_forward(cell_emb, gene_embs, cell_size_emb, params)
    assert pred.shape == (B, L), pred.shape
    # bf16 gene-matmul inputs with f32 accumulation: looser tolerance vs f32 ref.
    assert jnp.allclose(pred, ref, atol=5e-2, rtol=1e-2), (
        float(jnp.max(jnp.abs(pred - ref))))

    print("KERNEL_OK")
</pallas_src>

<mosaic_0001>
module attributes {stable_mosaic.version = 11 : i64} {
  func.func @stm_kernel(%arg0: i32, %arg1: i32, %arg2: memref<1x256x128xf32, #tpu.memory_space<vmem>>, %arg3: memref<1x1x128xf32, #tpu.memory_space<vmem>>, %arg4: memref<128x128xbf16, #tpu.memory_space<vmem>>, %arg5: memref<1x128xf32, #tpu.memory_space<vmem>>, %arg6: memref<1x1x256xf32, #tpu.memory_space<vmem>>) attributes {dimension_semantics = [#tpu.dimension_semantics<parallel>, #tpu.dimension_semantics<parallel>], iteration_bounds = array<i64: 2, 1>, scalar_prefetch = 0 : i64, scratch_operands = 0 : i64, tpu.core_type = #tpu.core_type<tc>, window_params = [{transform_indices = @transform_0, window_bounds = array<i64: 1, 256, 128>}, {transform_indices = @transform_1, window_bounds = array<i64: 1, 1, 128>}, {pipeline_mode = #tpu.pipeline_mode<synchronous>, transform_indices = @transform_2, window_bounds = array<i64: 128, 128>}, {pipeline_mode = #tpu.pipeline_mode<synchronous>, transform_indices = @transform_3, window_bounds = array<i64: 1, 128>}, {transform_indices = @transform_4, window_bounds = array<i64: 1, 1, 256>}]} {
    %c0 = arith.constant 0 : index
    %c0_0 = arith.constant 0 : index
    %c0_1 = arith.constant 0 : index
    %0 = vector.load %arg2[%c0, %c0_0, %c0_1] : memref<1x256x128xf32, #tpu.memory_space<vmem>>, vector<1x256x128xf32>
    %1 = vector.shape_cast %0 : vector<1x256x128xf32> to vector<256x128xf32>
    %2 = arith.truncf %1 : vector<256x128xf32> to vector<256x128xbf16>
    %c0_2 = arith.constant 0 : index
    %c0_3 = arith.constant 0 : index
    %3 = vector.load %arg4[%c0_2, %c0_3] : memref<128x128xbf16, #tpu.memory_space<vmem>>, vector<128x128xbf16>
    %cst = arith.constant dense<0.000000e+00> : vector<256x128xf32>
    %4 = tpu.matmul %2, %3, %cst {dimension_numbers = #tpu.dot_dimension_numbers<[1], [0], [0], [1], [0, 0, 1, 1], [], []>} : vector<256x128xbf16>, vector<128x128xbf16>, vector<256x128xf32> -> vector<256x128xf32>
    %c0_4 = arith.constant 0 : index
    %c0_5 = arith.constant 0 : index
    %5 = vector.load %arg5[%c0_4, %c0_5] : memref<1x128xf32, #tpu.memory_space<vmem>>, vector<1x128xf32>
    %6 = vector.broadcast %5 : vector<1x128xf32> to vector<256x128xf32>
    %7 = arith.addf %4, %6 : vector<256x128xf32>
    %cst_6 = arith.constant 5.000000e-01 : f32
    %8 = vector.broadcast %cst_6 : f32 to vector<256x128xf32>
    %9 = arith.mulf %8, %7 : vector<256x128xf32>
    %10 = math.tanh %9 : vector<256x128xf32>
    %cst_7 = arith.constant 1.000000e+00 : f32
    %11 = vector.broadcast %cst_7 : f32 to vector<256x128xf32>
    %12 = arith.addf %10, %11 : vector<256x128xf32>
    %cst_8 = arith.constant 5.000000e-01 : f32
    %13 = vector.broadcast %cst_8 : f32 to vector<256x128xf32>
    %14 = arith.mulf %13, %12 : vector<256x128xf32>
    %c0_9 = arith.constant 0 : index
    %c0_10 = arith.constant 0 : index
    %c0_11 = arith.constant 0 : index
    %15 = vector.load %arg3[%c0_9, %c0_10, %c0_11] : memref<1x1x128xf32, #tpu.memory_space<vmem>>, vector<1x1x128xf32>
    %16 = vector.shape_cast %15 : vector<1x1x128xf32> to vector<1x128xf32>
    %cst_12 = arith.constant dense<0.000000e+00> : vector<1x256xf32>
    %17 = tpu.matmul %16, %14, %cst_12 {dimension_numbers = #tpu.dot_dimension_numbers<[1], [1], [0], [0], [0, 0, 1, 0], [], []>} : vector<1x128xf32>, vector<256x128xf32>, vector<1x256xf32> -> vector<1x256xf32>
    %c0_13 = arith.constant 0 : index
    %c0_14 = arith.constant 0 : index
    %c0_15 = arith.constant 0 : index
    %18 = vector.load %arg6[%c0_13, %c0_14, %c0_15] : memref<1x1x256xf32, #tpu.memory_space<vmem>>, vector<1x1x256xf32>
    %19 = vector.shape_cast %18 : vector<1x1x256xf32> to vector<1x256xf32>
    %20 = vector.shape_cast %17 : vector<1x256xf32> to vector<1x1x256xf32>
    tpu.vector_store %arg6[%c0_13, %c0_14, %c0_15], %20 {strides = array<i32>} : memref<1x1x256xf32, #tpu.memory_space<vmem>>, vector<1x1x256xf32>,
    return
  }
  func.func @transform_0(%arg0: i32, %arg1: i32) -> (i32, i32, i32) {
    %c0_i32 = arith.constant 0 : i32
    %c0_i32_0 = arith.constant 0 : i32
    return %arg0, %arg1, %c0_i32 : i32, i32, i32
  }
  func.func @transform_1(%arg0: i32, %arg1: i32) -> (i32, i32, i32) {
    %c0_i32 = arith.constant 0 : i32
    %c0_i32_0 = arith.constant 0 : i32
    %c0_i32_1 = arith.constant 0 : i32
    return %arg0, %c0_i32, %c0_i32_0 : i32, i32, i32
  }
  func.func @transform_2(%arg0: i32, %arg1: i32) -> (i32, i32) {
    %c0_i32 = arith.constant 0 : i32
    %c0_i32_0 = arith.constant 0 : i32
    %c0_i32_1 = arith.constant 0 : i32
    return %c0_i32, %c0_i32_0 : i32, i32
  }
  func.func @transform_3(%arg0: i32, %arg1: i32) -> (i32, i32) {
    %c0_i32 = arith.constant 0 : i32
    %c0_i32_0 = arith.constant 0 : i32
    %c0_i32_1 = arith.constant 0 : i32
    return %c0_i32, %c0_i32_0 : i32, i32
  }
  func.func @transform_4(%arg0: i32, %arg1: i32) -> (i32, i32, i32) {
    %c0_i32 = arith.constant 0 : i32
    %c0_i32_0 = arith.constant 0 : i32
    return %arg0, %c0_i32, %arg1 : i32, i32, i32
  }
}

</mosaic_0001>

<llo_original>
// kernel: tpu_custom_call.1
$region0: #{tpu_custom_call.1}
  #allocation0 [shape = 'u32[]', space=smem, size = 0x4, offset = 0x4, fixed_abs, tag = 'smem constant byte address 0x4 - core index']
  #allocation1 [shape = 'u32[144,128]{1,0:T(1,128)}', space=vmem, size = 0x12000, scoped, tag = 'internal scratch']
  %s0 = inlined_call_operand.vmem [shape: f32[2,129,128], index: 0, kind: input, shape index: {}]
  %s1 = inlined_call_operand.vmem [shape: f32[2,1,128], index: 1, kind: input, shape index: {}]
  %s2 = inlined_call_operand.vmem [shape: bf16[128,128], index: 2, kind: input, shape index: {}]
  %s3 = inlined_call_operand.vmem [shape: f32[1,128], index: 3, kind: input, shape index: {}]
  %s4 = inlined_call_operand.hbm [shape: f32[2,1,256], index: 4, kind: output, shape index: {}]
  %s5 = sld [smem:[#allocation0]]
  $region49: #{tpu_custom_call.1} parent=0
    _
  %s7 = ssub.s32 1, %s5
  %s8 = scalar_select 0, %s7, %s5
  $region1: #{tpu_custom_call.1} parent=0
    #allocation2 [shape = 'u8[2048]{0}', space=vmem, size = 0x800, scoped, tag = 'output window, operand 0']
    #allocation3 [shape = 's32[2]{0}', space=sflag, size = 0x8, scoped, tag = 'scoped memory for tpu_custom_call.1']
    %9 = vsyncpa [#allocation3], 0
    %s10 = scalar_lea.sflag [#allocation3], 1
    %11 = vsyncpa %s10, 0
    loop: start=0, step=1, limit=4
    $region2: #{tpu_custom_call.1} parent=1 // loop_pre_header
      _
    $region3: #{tpu_custom_call.1} parent=1 // loop_header
      %s13 = sphi 0, %s17
      %p14 = scmp.ge.s32.totalorder %s13, 4
      %s20 = sphi 0, %s32
      %s21 = sphi 0, %s28
      %s22 = sphi 0, %s20
      %s23 = sphi 0, %s21
      %s24 = sphi 0, %s22
      %s25 = sphi 0, %s23
      %s37 = sphi 0, %s39
      %s40 = sphi 0, %s37
      %s41 = sphi 0, %s40
      %s57 = sphi 0, %s41
      %s63 = sphi 0, %s65
      %s66 = sphi 0, %s63
      %s67 = sphi 0, %s66
      %s83 = sphi 0, %s67
      %s87 = sphi 0, %s87
      %s89 = sphi 0, %s87
      %s90 = sphi 0, %s89
      %s104 = sphi 0, %s90
      %s108 = sphi 0, %s108
      %s110 = sphi 0, %s108
      %s111 = sphi 0, %s110
      %s125 = sphi 0, %s111
      %s133 = sphi 0, %s135
      %s136 = sphi 0, %s133
      %s137 = sphi 0, %s136
      %s153 = sphi 0, %s137
    $region4: #{tpu_custom_call.1} parent=1 // loop_header_branch
      %16 = sbr.rel (%p14) target = $region8
    $region5: #{tpu_custom_call.1} parent=1 // loop_body
      %s18 = ssub.s32 %s13, 1
      %s19 = ssub.s32 %s13, 2
      %s26 = sadd.s32 1, %s21
      %p27 = scmp.ge.s32.totalorder %s26, 1
      %s28 = scalar_select %p27, 0, %s26
      %s29 = sadd.s32 1, %s20
      %s30 = scalar_select %p27, %s29, %s20
      %p31 = scmp.ge.s32.totalorder %s30, 2
      %s32 = scalar_select %p31, 0, %s30
      %s33 = ssub.s32 %s20, %s32
      %s34 = ssub.s32 %s21, %s28
      %s35 = sor.u32 %s33, %s34
      %p36 = scmp.eq.s32.totalorder %s35, 0
      %s38 = sadd.s32 %s37, 1
      %s39 = scalar_select %p36, %s37, %s38
      %p42 = pneg %p36
      %p43 = scmp.eq.s32.totalorder %s13, 1
      %p44 = por %p42, %p43
      %p45 = scmp.ne.s32.totalorder %s37, %s40
      %p46 = scmp.eq.s32.totalorder %s13, 0
      %p47 = por %p45, %p46
      %p48 = scmp.ne.s32.totalorder %s37, %s40
      %p49 = scmp.eq.s32.totalorder %s18, 1
      %p50 = por %p48, %p49
      %p51 = scmp.ne.s32.totalorder %s40, %s41
      %p52 = scmp.eq.s32.totalorder %s18, 0
      %p53 = por %p51, %p52
      %p54 = scmp.ne.s32.totalorder %s40, %s41
      %p55 = scmp.eq.s32.totalorder %s19, 1
      %p56 = por %p54, %p55
      %p58 = scmp.ne.s32.totalorder %s41, %s57
      %p59 = scmp.eq.s32.totalorder %s19, 0
      %p60 = por %p58, %p59
      %s61 = ssub.s32 %s20, %s32
      %p62 = scmp.eq.s32.totalorder %s61, 0
      %s64 = sadd.s32 %s63, 1
      %s65 = scalar_select %p62, %s63, %s64
      %p68 = pneg %p62
      %p69 = scmp.eq.s32.totalorder %s13, 1
      %p70 = por %p68, %p69
      %p71 = scmp.ne.s32.totalorder %s63, %s66
      %p72 = scmp.eq.s32.totalorder %s13, 0
      %p73 = por %p71, %p72
      %p74 = scmp.ne.s32.totalorder %s63, %s66
      %p75 = scmp.eq.s32.totalorder %s18, 1
      %p76 = por %p74, %p75
      %p77 = scmp.ne.s32.totalorder %s66, %s67
      %p78 = scmp.eq.s32.totalorder %s18, 0
      %p79 = por %p77, %p78
      %p80 = scmp.ne.s32.totalorder %s66, %s67
      %p81 = scmp.eq.s32.totalorder %s19, 1
      %p82 = por %p80, %p81
      %p84 = scmp.ne.s32.totalorder %s67, %s83
      %p85 = scmp.eq.s32.totalorder %s19, 0
      %p86 = por %p84, %p85
      %s88 = sadd.s32 %s87, 1
      %p91 = scmp.eq.s32.totalorder %s13, 1
      %p92 = scmp.ne.s32.totalorder %s87, %s89
      %p93 = scmp.eq.s32.totalorder %s13, 0
      %p94 = por %p92, %p93
      %p95 = scmp.ne.s32.totalorder %s87, %s89
      %p96 = scmp.eq.s32.totalorder %s18, 1
      %p97 = por %p95, %p96
      %p98 = scmp.ne.s32.totalorder %s89, %s90
      %p99 = scmp.eq.s32.totalorder %s18, 0
      %p100 = por %p98, %p99
      %p101 = scmp.ne.s32.totalorder %s89, %s90
      %p102 = scmp.eq.s32.totalorder %s19, 1
      %p103 = por %p101, %p102
      %p105 = scmp.ne.s32.totalorder %s90, %s104
      %p106 = scmp.eq.s32.totalorder %s19, 0
      %p107 = por %p105, %p106
      %s109 = sadd.s32 %s108, 1
      %p112 = scmp.eq.s32.totalorder %s13, 1
      %p113 = scmp.ne.s32.totalorder %s108, %s110
      %p114 = scmp.eq.s32.totalorder %s13, 0
      %p115 = por %p113, %p114
      %p116 = scmp.ne.s32.totalorder %s108, %s110
      %p117 = scmp.eq.s32.totalorder %s18, 1
      %p118 = por %p116, %p117
      %p119 = scmp.ne.s32.totalorder %s110, %s111
      %p120 = scmp.eq.s32.totalorder %s18, 0
      %p121 = por %p119, %p120
      %p122 = scmp.ne.s32.totalorder %s110, %s111
      %p123 = scmp.eq.s32.totalorder %s19, 1
      %p124 = por %p122, %p123
      %p126 = scmp.ne.s32.totalorder %s111, %s125
      %p127 = scmp.eq.s32.totalorder %s19, 0
      %p128 = por %p126, %p127
      %s129 = ssub.s32 %s20, %s32
      %s130 = ssub.s32 %s21, %s28
      %s131 = sor.u32 %s129, %s130
      %p132 = scmp.eq.s32.totalorder %s131, 0
      %s134 = sadd.s32 %s133, 1
      %s135 = scalar_select %p132, %s133, %s134
      %p138 = pneg %p132
      %p139 = scmp.eq.s32.totalorder %s13, 1
      %p140 = por %p138, %p139
      %p141 = scmp.ne.s32.totalorder %s133, %s136
      %p142 = scmp.eq.s32.totalorder %s13, 0
      %p143 = por %p141, %p142
      %p144 = scmp.ne.s32.totalorder %s133, %s136
      %p145 = scmp.eq.s32.totalorder %s18, 1
      %p146 = por %p144, %p145
      %p147 = scmp.ne.s32.totalorder %s136, %s137
      %p148 = scmp.eq.s32.totalorder %s18, 0
      %p149 = por %p147, %p148
      %p150 = scmp.ne.s32.totalorder %s136, %s137
      %p151 = scmp.eq.s32.totalorder %s19, 1
      %p152 = por %p150, %p151
      %p154 = scmp.ne.s32.totalorder %s137, %s153
      %p155 = scmp.eq.s32.totalorder %s19, 0
      %p156 = por %p154, %p155
      %p157 = scmp.le.s32.totalorder 1, %s13
      %p158 = scmp.lt.s32.totalorder %s13, 3
      %p159 = pnand %p157, %p158
      %p160 = pneg %p159
      // Predicated region
      $region9: #{tpu_custom_call.1} parent=5 // pred_check
        _
      $region10: #{tpu_custom_call.1} parent=5 // pred_check_branch
        %162 = sbr.rel (%p159) target = $region12
      $region11: #{tpu_custom_call.1} parent=5 // pred_region
        %s163 = ssub.s32 %s13, 1
        // Predicated region
        $region13: #{tpu_custom_call.1} parent=11 // pred_check
          %p164 = pneg %p100
        $region14: #{tpu_custom_call.1} parent=11 // pred_check_branch
          %166 = sbr.rel (%p164) target = $region16
        $region15: #{tpu_custom_call.1} parent=11 // pred_region
          _
        $region16: #{tpu_custom_call.1} parent=11 // pred_fallthru
          _
        // Predicated region
        $region17: #{tpu_custom_call.1} parent=11 // pred_check
          %p167 = pneg %p121
        $region18: #{tpu_custom_call.1} parent=11 // pred_check_branch
          %169 = sbr.rel (%p167) target = $region20
        $region19: #{tpu_custom_call.1} parent=11 // pred_region
          _
        $region20: #{tpu_custom_call.1} parent=11 // pred_fallthru
          _
      $region12: #{tpu_custom_call.1} parent=5 // pred_fallthru
        _
      %p170 = scmp.lt.s32.totalorder %s13, 2
      // Predicated region
      $region21: #{tpu_custom_call.1} parent=5 // pred_check
        %p171 = pneg %p170
      $region22: #{tpu_custom_call.1} parent=5 // pred_check_branch
        %173 = sbr.rel (%p171) target = $region24
      $region23: #{tpu_custom_call.1} parent=5 // pred_region
        // Predicated region
        $region25: #{tpu_custom_call.1} parent=23 // pred_check
          %p174 = pneg %p47
        $region26: #{tpu_custom_call.1} parent=23 // pred_check_branch
          %176 = sbr.rel (%p174) target = $region28
        $region27: #{tpu_custom_call.1} parent=23 // pred_region
          %s177 = smul.u32 32, %s21
          %s178 = ssub.s32 17, %s177
          %s179 = smul.u32 128, %s178
          %p180 = scmp.lt.s32.totalorder %s20, 1
          %s181 = scalar_select %p180, %s20, 1
          %p182 = scmp.lt.s32.totalorder %s177, 16
          %s183 = scalar_select %p182, %s177, 16
          %s184 = smul.addr %s181, 17
          %s185 = sadd.s32 %s183, %s184
          %s186 = smul.addr %s185, 8
          %s187 = scalar_lea.vmem %s0, %s186
          %s188 = smul.u32 32, %s21
          %s189 = ssub.s32 17, %s188
          %s190 = smul.u32 128, %s189
        $region28: #{tpu_custom_call.1} parent=23 // pred_fallthru
          _
        // Predicated region
        $region29: #{tpu_custom_call.1} parent=23 // pred_check
          %p191 = pneg %p73
        $region30: #{tpu_custom_call.1} parent=23 // pred_check_branch
          %193 = sbr.rel (%p191) target = $region32
        $region31: #{tpu_custom_call.1} parent=23 // pred_region
          %p194 = scmp.lt.s32.totalorder %s20, 1
          %s195 = scalar_select %p194, %s20, 1
          %s196 = scalar_lea.vmem %s1, %s195
        $region32: #{tpu_custom_call.1} parent=23 // pred_fallthru
          _
      $region24: #{tpu_custom_call.1} parent=5 // pred_fallthru
        _
      %p197 = scmp.le.s32.totalorder 1, %s13
      %p198 = scmp.lt.s32.totalorder %s13, 3
      %p199 = pnand %p197, %p198
      %p200 = pneg %p199
      // Predicated region
      $region33: #{tpu_custom_call.1} parent=5 // pred_check
        _
      $region34: #{tpu_custom_call.1} parent=5 // pred_check_branch
        %202 = sbr.rel (%p199) target = $region36
      $region35: #{tpu_custom_call.1} parent=5 // pred_region
        %s203 = ssub.s32 %s13, 1
        %s204 = smul.u32 32, %s23
        %s205 = ssub.s32 17, %s204
        %s206 = smul.u32 128, %s205
        %p207 = scmp.lt.s32.totalorder %s22, 1
        %s208 = scalar_select %p207, %s22, 1
        %p209 = scmp.lt.s32.totalorder %s204, 16
        %s210 = scalar_select %p209, %s204, 16
        %s211 = smul.addr %s208, 17
        %s212 = sadd.s32 %s210, %s211
        %s213 = smul.addr %s212, 8
        %s214 = scalar_lea.vmem %s0, %s213
        %p215 = pneg %p53
        %p216 = pneg %p50
        %p217 = scmp.lt.s32.totalorder %s22, 1
        %s218 = scalar_select %p217, %s22, 1
        %s219 = scalar_lea.vmem %s1, %s218
        %p220 = pneg %p79
        %p221 = pneg %p76
        %p222 = pneg %p100
        %p223 = pneg %p97
        %p224 = pneg %p121
        %p225 = pneg %p118
        %p226 = pneg %p149
        %p227 = pneg %p146
        %s228 = sand.u32 %s136, 1
        %s229 = scalar_lea.sflag [#allocation3], %s228
        %s230 = sand.u32 %s136, 1
        %s231 = smul.addr %s230, 2
        %s232 = scalar_lea.vmem [#allocation2], %s231
        %s233 = smul.u32 32, %s23
        %s234 = ssub.s32 17, %s233
        %s235 = smul.u32 128, %s234
        %p236 = scmp.lt.s32.totalorder %s22, 1
        %s237 = scalar_select %p236, %s22, 1
        %p238 = scmp.lt.s32.totalorder %s233, 16
        %s239 = scalar_select %p238, %s233, 16
        %s240 = smul.addr %s237, 17
        %s241 = sadd.s32 %s239, %s240
        %s242 = smul.addr %s241, 8
        %s243 = scalar_lea.vmem %s0, %s242
        %s244 = smul.u32 32, %s23
        %s245 = ssub.s32 17, %s244
        %s246 = smul.u32 128, %s245
        %p247 = scmp.lt.s32.totalorder %s22, 1
        %s248 = scalar_select %p247, %s22, 1
        %s249 = scalar_lea.vmem %s1, %s248
        %s250 = smul.u32 2, %s23
        %v252 = vld [vmem:[%s243] sm:$0xff]
        %v253 = vld [vmem:[%s243 + $0x8] sm:$0xff]
        %v254 = vld [vmem:[%s243 + $0x10] sm:$0xff]
        %v255 = vld [vmem:[%s243 + $0x18] sm:$0xff]
        %v256 = vld [vmem:[%s243 + $0x20] sm:$0xff]
        %v257 = vld [vmem:[%s243 + $0x28] sm:$0xff]
        %v258 = vld [vmem:[%s243 + $0x30] sm:$0xff]
        %v259 = vld [vmem:[%s243 + $0x38] sm:$0xff]
        %v260 = vld [vmem:[%s243 + $0x40] sm:$0xff]
        %v261 = vld [vmem:[%s243 + $0x48] sm:$0xff]
        %v262 = vld [vmem:[%s243 + $0x50] sm:$0xff]
        %v263 = vld [vmem:[%s243 + $0x58] sm:$0xff]
        %v264 = vld [vmem:[%s243 + $0x60] sm:$0xff]
        %v265 = vld [vmem:[%s243 + $0x68] sm:$0xff]
        %v266 = vld [vmem:[%s243 + $0x70] sm:$0xff]
        %v267 = vld [vmem:[%s243 + $0x78] sm:$0xff]
        %v268 = vld [vmem:[%s243 + $0x80] sm:$0xff]
        %v269 = vld [vmem:[%s243 + $0x88] sm:$0xff]
        %v270 = vld [vmem:[%s243 + $0x90] sm:$0xff]
        %v271 = vld [vmem:[%s243 + $0x98] sm:$0xff]
        %v272 = vld [vmem:[%s243 + $0xa0] sm:$0xff]
        %v273 = vld [vmem:[%s243 + $0xa8] sm:$0xff]
        %v274 = vld [vmem:[%s243 + $0xb0] sm:$0xff]
        %v275 = vld [vmem:[%s243 + $0xb8] sm:$0xff]
        %v276 = vld [vmem:[%s243 + $0xc0] sm:$0xff]
        %v277 = vld [vmem:[%s243 + $0xc8] sm:$0xff]
        %v278 = vld [vmem:[%s243 + $0xd0] sm:$0xff]
        %v279 = vld [vmem:[%s243 + $0xd8] sm:$0xff]
        %v280 = vld [vmem:[%s243 + $0xe0] sm:$0xff]
        %v281 = vld [vmem:[%s243 + $0xe8] sm:$0xff]
        %v282 = vld [vmem:[%s243 + $0xf0] sm:$0xff]
        %v283 = vld [vmem:[%s243 + $0xf8] sm:$0xff]
        %v284 = vpack.c.bf16 %v253, %v252
        %v285 = vpack.c.bf16 %v255, %v254
        %v286 = vpack.c.bf16 %v257, %v256
        %v287 = vpack.c.bf16 %v259, %v258
        %v288 = vpack.c.bf16 %v261, %v260
        %v289 = vpack.c.bf16 %v263, %v262
        %v290 = vpack.c.bf16 %v265, %v264
        %v291 = vpack.c.bf16 %v267, %v266
        %v292 = vpack.c.bf16 %v269, %v268
        %v293 = vpack.c.bf16 %v271, %v270
        %v294 = vpack.c.bf16 %v273, %v272
        %v295 = vpack.c.bf16 %v275, %v274
        %v296 = vpack.c.bf16 %v277, %v276
        %v297 = vpack.c.bf16 %v279, %v278
        %v298 = vpack.c.bf16 %v281, %v280
        %v299 = vpack.c.bf16 %v283, %v282
        %v300 = vld [vmem:[%s2] sm:$0xf]
        %v301 = vld [vmem:[%s2 + $0x4] sm:$0xf]
        %v302 = vld [vmem:[%s2 + $0x8] sm:$0xf]
        %v303 = vld [vmem:[%s2 + $0xc] sm:$0xf]
        %v304 = vld [vmem:[%s2 + $0x10] sm:$0xf]
        %v305 = vld [vmem:[%s2 + $0x14] sm:$0xf]
        %v306 = vld [vmem:[%s2 + $0x18] sm:$0xf]
        %v307 = vld [vmem:[%s2 + $0x1c] sm:$0xf]
        %v308 = vld [vmem:[%s2 + $0x20] sm:$0xf]
        %v309 = vld [vmem:[%s2 + $0x24] sm:$0xf]
        %v310 = vld [vmem:[%s2 + $0x28] sm:$0xf]
        %v311 = vld [vmem:[%s2 + $0x2c] sm:$0xf]
        %v312 = vld [vmem:[%s2 + $0x30] sm:$0xf]
        %v313 = vld [vmem:[%s2 + $0x34] sm:$0xf]
        %v314 = vld [vmem:[%s2 + $0x38] sm:$0xf]
        %v315 = vld [vmem:[%s2 + $0x3c] sm:$0xf]
        %v316 = vld [vmem:[%s3] sm:$0x1]
        %v318 = vlaneseq
        %v319 = vshrl.u32 %v318, 7
        %v320 = vsub.s32 0, %v319
        %v321 = vrot.slane %v316, %v320
        %v339 = vunpack.c.l.b16 %v300
        %v340 = vunpack.c.l.b16 %v301
        %v341 = vunpack.c.l.b16 %v302
        %v342 = vunpack.c.l.b16 %v303
        %v343 = vunpack.c.l.b16 %v304
        %v344 = vunpack.c.l.b16 %v305
        %v345 = vunpack.c.l.b16 %v306
        %v346 = vunpack.c.l.b16 %v307
        %v347 = vunpack.c.l.b16 %v308
        %v348 = vunpack.c.l.b16 %v309
        %v349 = vunpack.c.l.b16 %v310
        %v350 = vunpack.c.l.b16 %v311
        %v351 = vunpack.c.l.b16 %v312
        %v352 = vunpack.c.l.b16 %v313
        %v353 = vunpack.c.l.b16 %v314
        %v354 = vunpack.c.l.b16 %v315
        %v355 = vpack.c.b16 %v340, %v339
        %v356 = vpack.c.b16 %v342, %v341
        %v357 = vpack.c.b16 %v344, %v343
        %v358 = vpack.c.b16 %v346, %v345
        %v359 = vpack.c.b16 %v348, %v347
        %v360 = vpack.c.b16 %v350, %v349
        %v361 = vpack.c.b16 %v352, %v351
        %v362 = vpack.c.b16 %v354, %v353
        %371 = vmatprep.subr.bf16.mxu0 0
        %372 = vmatpush1.bf16.msra.mxu0 %v355
        %373 = vmatprep.subr.bf16.mxu0 0
        %374 = vmatpush1.bf16.msra.mxu0 %v356
        %375 = vmatprep.subr.bf16.mxu0 0
        %376 = vmatpush1.bf16.msra.mxu0 %v357
        %377 = vmatprep.subr.bf16.mxu0 0
        %378 = vmatpush1.bf16.msra.mxu0 %v358
        %379 = vmatprep.subr.bf16.mxu0 0
        %380 = vmatpush1.bf16.msra.mxu0 %v359
        %381 = vmatprep.subr.bf16.mxu0 0
        %382 = vmatpush1.bf16.msra.mxu0 %v360
        %383 = vmatprep.subr.bf16.mxu0 0
        %384 = vmatpush1.bf16.msra.mxu0 %v361
        %385 = vmatprep.subr.bf16.mxu0 0
        %386 = vmatpush1.bf16.msra.mxu0 %v362
        %387 = vmatprep.subr.bf16.mxu0 0
        %388 = vmatpush1.bf16.msra.mxu0 0
        %389 = vmatprep.subr.bf16.mxu0 0
        %390 = vmatpush1.bf16.msra.mxu0 0
        %391 = vmatprep.subr.bf16.mxu0 0
        %392 = vmatpush1.bf16.msra.mxu0 0
        %393 = vmatprep.subr.bf16.mxu0 0
        %394 = vmatpush1.bf16.msra.mxu0 0
        %395 = vmatprep.subr.bf16.mxu0 0
        %396 = vmatpush1.bf16.msra.mxu0 0
        %397 = vmatprep.subr.bf16.mxu0 0
        %398 = vmatpush1.bf16.msra.mxu0 0
        %399 = vmatprep.subr.bf16.mxu0 0
        %400 = vmatpush1.bf16.msra.mxu0 0
        %401 = vmatprep.subr.bf16.mxu0 0
        %402 = vmatpush1.bf16.msra.mxu0 0
        %403 = vmatprep.mubr.bf16.mxu0 0
        %404 = vmatmul.mubr.bf16.gmra.mrb[0].mxu0 %v284
        %v405 = vpop.f32.mrb[0].mxu0
        %v406 = vadd.f32 %v321, %v405
        %v407 = vpop.f32.mrb[0].mxu0
        %v408 = vpop.f32.mrb[0].mxu0
        %v409 = vadd.f32 %v321, %v408
        %v410 = vpop.f32.mrb[0].mxu0
        %411 = vmatprep.mubr.bf16.mxu0 0
        %412 = vmatmul.mubr.bf16.gmra.mrb[0].mxu0 %v285
        %v413 = vpop.f32.mrb[0].mxu0
        %v414 = vadd.f32 %v321, %v413
        %v415 = vpop.f32.mrb[0].mxu0
        %v416 = vpop.f32.mrb[0].mxu0
        %v417 = vadd.f32 %v321, %v416
        %v418 = vpop.f32.mrb[0].mxu0
        %419 = vmatprep.mubr.bf16.mxu0 0
        %420 = vmatmul.mubr.bf16.gmra.mrb[0].mxu0 %v286
        %v421 = vpop.f32.mrb[0].mxu0
        %v422 = vadd.f32 %v321, %v421
        %v423 = vpop.f32.mrb[0].mxu0
        %v424 = vpop.f32.mrb[0].mxu0
        %v425 = vadd.f32 %v321, %v424
        %v426 = vpop.f32.mrb[0].mxu0
        %427 = vmatprep.mubr.bf16.mxu0 0
        %428 = vmatmul.mubr.bf16.gmra.mrb[0].mxu0 %v287
        %v429 = vpop.f32.mrb[0].mxu0
        %v430 = vadd.f32 %v321, %v429
        %v431 = vpop.f32.mrb[0].mxu0
        %v432 = vpop.f32.mrb[0].mxu0
        %v433 = vadd.f32 %v321, %v432
        %v434 = vpop.f32.mrb[0].mxu0
        %435 = vmatprep.mubr.bf16.mxu0 0
        %436 = vmatmul.mubr.bf16.gmra.mrb[0].mxu0 %v288
        %v437 = vpop.f32.mrb[0].mxu0
        %v438 = vadd.f32 %v321, %v437
        %v439 = vpop.f32.mrb[0].mxu0
        %v440 = vpop.f32.mrb[0].mxu0
        %v441 = vadd.f32 %v321, %v440
        %v442 = vpop.f32.mrb[0].mxu0
        %443 = vmatprep.mubr.bf16.mxu0 0
        %444 = vmatmul.mubr.bf16.gmra.mrb[0].mxu0 %v289
        %v445 = vpop.f32.mrb[0].mxu0
        %v446 = vadd.f32 %v321, %v445
        %v447 = vpop.f32.mrb[0].mxu0
        %v448 = vpop.f32.mrb[0].mxu0
        %v449 = vadd.f32 %v321, %v448
        %v450 = vpop.f32.mrb[0].mxu0
        %451 = vmatprep.mubr.bf16.mxu0 0
        %452 = vmatmul.mubr.bf16.gmra.mrb[0].mxu0 %v290
        %v453 = vpop.f32.mrb[0].mxu0
        %v454 = vadd.f32 %v321, %v453
        %v455 = vpop.f32.mrb[0].mxu0
        %v456 = vpop.f32.mrb[0].mxu0
        %v457 = vadd.f32 %v321, %v456
        %v458 = vpop.f32.mrb[0].mxu0
        %459 = vmatprep.mubr.bf16.mxu0 0
        %460 = vmatmul.mubr.bf16.gmra.mrb[0].mxu0 %v291
        %v461 = vpop.f32.mrb[0].mxu0
        %v462 = vadd.f32 %v321, %v461
        %v463 = vpop.f32.mrb[0].mxu0
        %v464 = vpop.f32.mrb[0].mxu0
        %v465 = vadd.f32 %v321, %v464
        %v466 = vpop.f32.mrb[0].mxu0
        %467 = vmatprep.mubr.bf16.mxu0 0
        %468 = vmatmul.mubr.bf16.gmra.mrb[0].mxu0 %v292
        %v469 = vpop.f32.mrb[0].mxu0
        %v470 = vadd.f32 %v321, %v469
        %v471 = vpop.f32.mrb[0].mxu0
        %v472 = vpop.f32.mrb[0].mxu0
        %v473 = vadd.f32 %v321, %v472
        %v474 = vpop.f32.mrb[0].mxu0
        %475 = vmatprep.mubr.bf16.mxu0 0
        %476 = vmatmul.mubr.bf16.gmra.mrb[0].mxu0 %v293
        %v477 = vpop.f32.mrb[0].mxu0
        %v478 = vadd.f32 %v321, %v477
        %v479 = vpop.f32.mrb[0].mxu0
        %v480 = vpop.f32.mrb[0].mxu0
        %v481 = vadd.f32 %v321, %v480
        %v482 = vpop.f32.mrb[0].mxu0
        %483 = vmatprep.mubr.bf16.mxu0 0
        %484 = vmatmul.mubr.bf16.gmra.mrb[0].mxu0 %v294
        %v485 = vpop.f32.mrb[0].mxu0
        %v486 = vadd.f32 %v321, %v485
        %v487 = vpop.f32.mrb[0].mxu0
        %v488 = vpop.f32.mrb[0].mxu0
        %v489 = vadd.f32 %v321, %v488
        %v490 = vpop.f32.mrb[0].mxu0
        %491 = vmatprep.mubr.bf16.mxu0 0
        %492 = vmatmul.mubr.bf16.gmra.mrb[0].mxu0 %v295
        %v493 = vpop.f32.mrb[0].mxu0
        %v494 = vadd.f32 %v321, %v493
        %v495 = vpop.f32.mrb[0].mxu0
        %v496 = vpop.f32.mrb[0].mxu0
        %v497 = vadd.f32 %v321, %v496
        %v498 = vpop.f32.mrb[0].mxu0
        %499 = vmatprep.mubr.bf16.mxu0 0
        %500 = vmatmul.mubr.bf16.gmra.mrb[0].mxu0 %v296
        %v501 = vpop.f32.mrb[0].mxu0
        %v502 = vadd.f32 %v321, %v501
        %v503 = vpop.f32.mrb[0].mxu0
        %v504 = vpop.f32.mrb[0].mxu0
        %v505 = vadd.f32 %v321, %v504
        %v506 = vpop.f32.mrb[0].mxu0
        %507 = vmatprep.mubr.bf16.mxu0 0
        %508 = vmatmul.mubr.bf16.gmra.mrb[0].mxu0 %v297
        %v509 = vpop.f32.mrb[0].mxu0
        %v510 = vadd.f32 %v321, %v509
        %v511 = vpop.f32.mrb[0].mxu0
        %v512 = vpop.f32.mrb[0].mxu0
        %v513 = vadd.f32 %v321, %v512
        %v514 = vpop.f32.mrb[0].mxu0
        %515 = vmatprep.mubr.bf16.mxu0 0
        %516 = vmatmul.mubr.bf16.gmra.mrb[0].mxu0 %v298
        %v517 = vpop.f32.mrb[0].mxu0
        %v518 = vadd.f32 %v321, %v517
        %v519 = vpop.f32.mrb[0].mxu0
        %v520 = vpop.f32.mrb[0].mxu0
        %v521 = vadd.f32 %v321, %v520
        %v522 = vpop.f32.mrb[0].mxu0
        %523 = vmatprep.mubr.bf16.mxu0 0
        %524 = vmatmul.mubr.bf16.gmra.mrb[0].mxu0 %v299
        %v525 = vpop.f32.mrb[0].mxu0
        %v526 = vadd.f32 %v321, %v525
        %v527 = vpop.f32.mrb[0].mxu0
        %v528 = vpop.f32.mrb[0].mxu0
        %v529 = vadd.f32 %v321, %v528
        %v530 = vpop.f32.mrb[0].mxu0
        %531 = vdwg.mxu0
        %v532 = vmul.f32 %v406, 0.5
        %v533 = vmul.f32 %v409, 0.5
        %v534 = vmul.f32 %v414, 0.5
        %v535 = vmul.f32 %v417, 0.5
        %v536 = vmul.f32 %v422, 0.5
        %v537 = vmul.f32 %v425, 0.5
        %v538 = vmul.f32 %v430, 0.5
        %v539 = vmul.f32 %v433, 0.5
        %v540 = vmul.f32 %v438, 0.5
        %v541 = vmul.f32 %v441, 0.5
        %v542 = vmul.f32 %v446, 0.5
        %v543 = vmul.f32 %v449, 0.5
        %v544 = vmul.f32 %v454, 0.5
        %v545 = vmul.f32 %v457, 0.5
        %v546 = vmul.f32 %v462, 0.5
        %v547 = vmul.f32 %v465, 0.5
        %v548 = vmul.f32 %v470, 0.5
        %v549 = vmul.f32 %v473, 0.5
        %v550 = vmul.f32 %v478, 0.5
        %v551 = vmul.f32 %v481, 0.5
        %v552 = vmul.f32 %v486, 0.5
        %v553 = vmul.f32 %v489, 0.5
        %v554 = vmul.f32 %v494, 0.5
        %v555 = vmul.f32 %v497, 0.5
        %v556 = vmul.f32 %v502, 0.5
        %v557 = vmul.f32 %v505, 0.5
        %v558 = vmul.f32 %v510, 0.5
        %v559 = vmul.f32 %v513, 0.5
        %v560 = vmul.f32 %v518, 0.5
        %v561 = vmul.f32 %v521, 0.5
        %v562 = vmul.f32 %v526, 0.5
        %v563 = vmul.f32 %v529, 0.5
        %v564 = vtanh.pop %v532
        %v565 = vtanh.pop %v533
        %v566 = vtanh.pop %v534
        %v567 = vtanh.pop %v535
        %v568 = vtanh.pop %v536
        %v569 = vtanh.pop %v537
        %v570 = vtanh.pop %v538
        %v571 = vtanh.pop %v539
        %v572 = vtanh.pop %v540
        %v573 = vtanh.pop %v541
        %v574 = vtanh.pop %v542
        %v575 = vtanh.pop %v543
        %v576 = vtanh.pop %v544
        %v577 = vtanh.pop %v545
        %v578 = vtanh.pop %v546
        %v579 = vtanh.pop %v547
        %v580 = vtanh.pop %v548
        %v581 = vtanh.pop %v549
        %v582 = vtanh.pop %v550
        %v583 = vtanh.pop %v551
        %v584 = vtanh.pop %v552
        %v585 = vtanh.pop %v553
        %v586 = vtanh.pop %v554
        %v587 = vtanh.pop %v555
        %v588 = vtanh.pop %v556
        %v589 = vtanh.pop %v557
        %v590 = vtanh.pop %v558
        %v591 = vtanh.pop %v559
        %v592 = vtanh.pop %v560
        %v593 = vtanh.pop %v561
        %v594 = vtanh.pop %v562
        %v595 = vtanh.pop %v563
        %v596 = vadd.f32 %v564, 1.0
        %v597 = vadd.f32 %v565, 1.0
        %v598 = vadd.f32 %v566, 1.0
        %v599 = vadd.f32 %v567, 1.0
        %v600 = vadd.f32 %v568, 1.0
        %v601 = vadd.f32 %v569, 1.0
        %v602 = vadd.f32 %v570, 1.0
        %v603 = vadd.f32 %v571, 1.0
        %v604 = vadd.f32 %v572, 1.0
        %v605 = vadd.f32 %v573, 1.0
        %v606 = vadd.f32 %v574, 1.0
        %v607 = vadd.f32 %v575, 1.0
        %v608 = vadd.f32 %v576, 1.0
        %v609 = vadd.f32 %v577, 1.0
        %v610 = vadd.f32 %v578, 1.0
        %v611 = vadd.f32 %v579, 1.0
        %v612 = vadd.f32 %v580, 1.0
        %v613 = vadd.f32 %v581, 1.0
        %v614 = vadd.f32 %v582, 1.0
        %v615 = vadd.f32 %v583, 1.0
        %v616 = vadd.f32 %v584, 1.0
        %v617 = vadd.f32 %v585, 1.0
        %v618 = vadd.f32 %v586, 1.0
        %v619 = vadd.f32 %v587, 1.0
        %v620 = vadd.f32 %v588, 1.0
        %v621 = vadd.f32 %v589, 1.0
        %v622 = vadd.f32 %v590, 1.0
        %v623 = vadd.f32 %v591, 1.0
        %v624 = vadd.f32 %v592, 1.0
        %v625 = vadd.f32 %v593, 1.0
        %v626 = vadd.f32 %v594, 1.0
        %v627 = vadd.f32 %v595, 1.0
        %v628 = vmul.f32 %v596, 0.5
        %v629 = vmul.f32 %v597, 0.5
        %v630 = vmul.f32 %v598, 0.5
        %v631 = vmul.f32 %v599, 0.5
        %v632 = vmul.f32 %v600, 0.5
        %v633 = vmul.f32 %v601, 0.5
        %v634 = vmul.f32 %v602, 0.5
        %v635 = vmul.f32 %v603, 0.5
        %v636 = vmul.f32 %v604, 0.5
        %v637 = vmul.f32 %v605, 0.5
        %v638 = vmul.f32 %v606, 0.5
        %v639 = vmul.f32 %v607, 0.5
        %v640 = vmul.f32 %v608, 0.5
        %v641 = vmul.f32 %v609, 0.5
        %v642 = vmul.f32 %v610, 0.5
        %v643 = vmul.f32 %v611, 0.5
        %v644 = vmul.f32 %v612, 0.5
        %v645 = vmul.f32 %v613, 0.5
        %v646 = vmul.f32 %v614, 0.5
        %v647 = vmul.f32 %v615, 0.5
        %v648 = vmul.f32 %v616, 0.5
        %v649 = vmul.f32 %v617, 0.5
        %v650 = vmul.f32 %v618, 0.5
        %v651 = vmul.f32 %v619, 0.5
        %v652 = vmul.f32 %v620, 0.5
        %v653 = vmul.f32 %v621, 0.5
        %v654 = vmul.f32 %v622, 0.5
        %v655 = vmul.f32 %v623, 0.5
        %v656 = vmul.f32 %v624, 0.5
        %v657 = vmul.f32 %v625, 0.5
        %v658 = vmul.f32 %v626, 0.5
        %v659 = vmul.f32 %v627, 0.5
        %v660 = vld [vmem:[%s249] sm:$0x1]
        %661 = vmatprep.subr.mxu0 0.0
        %662 = vmatpush1.xpose.msra.mxu0 %v628
        %663 = vmatprep.subr.mxu0 0.0
        %664 = vmatpush1.xpose.msra.mxu0 %v629
        %665 = vmatprep.subr.mxu0 0.0
        %666 = vmatpush1.xpose.msra.mxu0 %v630
        %667 = vmatprep.subr.mxu0 0.0
        %668 = vmatpush1.xpose.msra.mxu0 %v631
        %669 = vmatprep.subr.mxu0 0.0
        %670 = vmatpush1.xpose.msra.mxu0 %v632
        %671 = vmatprep.subr.mxu0 0.0
        %672 = vmatpush1.xpose.msra.mxu0 %v633
        %673 = vmatprep.subr.mxu0 0.0
        %674 = vmatpush1.xpose.msra.mxu0 %v634
        %675 = vmatprep.subr.mxu0 0.0
        %676 = vmatpush1.xpose.msra.mxu0 %v635
        %677 = vmatprep.subr.mxu0 0.0
        %678 = vmatpush1.xpose.msra.mxu0 %v636
        %679 = vmatprep.subr.mxu0 0.0
        %680 = vmatpush1.xpose.msra.mxu0 %v637
        %681 = vmatprep.subr.mxu0 0.0
        %682 = vmatpush1.xpose.msra.mxu0 %v638
        %683 = vmatprep.subr.mxu0 0.0
        %684 = vmatpush1.xpose.msra.mxu0 %v639
        %685 = vmatprep.subr.mxu0 0.0
        %686 = vmatpush1.xpose.msra.mxu0 %v640
        %687 = vmatprep.subr.mxu0 0.0
        %688 = vmatpush1.xpose.msra.mxu0 %v641
        %689 = vmatprep.subr.mxu0 0.0
        %690 = vmatpush1.xpose.msra.mxu0 %v642
        %691 = vmatprep.subr.mxu0 0.0
        %692 = vmatpush1.xpose.msra.mxu0 %v643
        %693 = vmatprep.subr.mxu0 0.0
        %694 = vmatpush1.xpose.msra.mxu0 %v644
        %695 = vmatprep.subr.mxu0 0.0
        %696 = vmatpush1.xpose.msra.mxu0 %v645
        %697 = vmatprep.subr.mxu0 0.0
        %698 = vmatpush1.xpose.msra.mxu0 %v646
        %699 = vmatprep.subr.mxu0 0.0
        %700 = vmatpush1.xpose.msra.mxu0 %v647
        %701 = vmatprep.subr.mxu0 0.0
        %702 = vmatpush1.xpose.msra.mxu0 %v648
        %703 = vmatprep.subr.mxu0 0.0
        %704 = vmatpush1.xpose.msra.mxu0 %v649
        %705 = vmatprep.subr.mxu0 0.0
        %706 = vmatpush1.xpose.msra.mxu0 %v650
        %707 = vmatprep.subr.mxu0 0.0
        %708 = vmatpush1.xpose.msra.mxu0 %v651
        %709 = vmatprep.subr.mxu0 0.0
        %710 = vmatpush1.xpose.msra.mxu0 %v652
        %711 = vmatprep.subr.mxu0 0.0
        %712 = vmatpush1.xpose.msra.mxu0 %v653
        %713 = vmatprep.subr.mxu0 0.0
        %714 = vmatpush1.xpose.msra.mxu0 %v654
        %715 = vmatprep.subr.mxu0 0.0
        %716 = vmatpush1.xpose.msra.mxu0 %v655
        %717 = vmatprep.subr.mxu0 0.0
        %718 = vmatpush1.xpose.msra.mxu0 %v656
        %719 = vmatprep.subr.mxu0 0.0
        %720 = vmatpush1.xpose.msra.mxu0 %v657
        %721 = vmatprep.subr.mxu0 0.0
        %722 = vmatpush1.xpose.msra.mxu0 %v658
        %723 = vmatprep.subr.mxu0 0.0
        %724 = vmatpush1.xpose.msra.mxu0 %v659
        %725 = vmatprep.mubr.f32.mxu0 0.0
        %726 = vmatmul.mubr.f32.gmra.mrb[0].mxu0 %v660
        %v727 = vpop.f32.mrb[0].mxu0
        %v728 = vadd.f32 0.0, %v727
        %v729 = vpop.f32.mrb[0].mxu0
        %v730 = vadd.f32 0.0, %v729
        %731 = vdwg.mxu0
        %v734 = vcombine.low %v728, %v730
        %v736 = vunpack.c.l.s4 1966171168
        %v737 = vunpack.c.0.s8 %v736
        %v738 = vlaneseq
        %v739 = vshrl.u32 %v738, 7
        %v740 = vsub.s32 %v737, %v739
        %v741 = vrot.slane %v734, %v740
        %v743 = vunpack.c.l.s4 1966171168
        %v744 = vunpack.c.0.s8 %v743
        %v745 = vlaneseq
        %v746 = vshrl.u32 %v745, 7
        %v747 = vsub.s32 %v744, %v746
        %v748 = vrot.slane %v741, %v747
        %v750 = vlaneseq
        %vm751 = vcmp.ge.s32.totalorder %v750, 0
        %vm752 = vcmp.lt.s32.totalorder %v750, 256
        %vm753 = vmand %vm751, %vm752
        %754 = vst.msk [vmem:[%s232] sm:$0x3] %vm753, %v748
        %s755 = sand.u32 %s136, 1
        %s756 = scalar_lea.sflag [#allocation3], %s755
        %s757 = sand.u32 %s136, 1
        %s758 = smul.addr %s757, 2
        %s759 = scalar_lea.vmem [#allocation2], %s758
        // Predicated region
        $region37: #{tpu_custom_call.1} parent=35 // pred_check
          %p760 = pneg %p146
        $region38: #{tpu_custom_call.1} parent=35 // pred_check_branch
          %762 = sbr.rel (%p760) target = $region40
        $region39: #{tpu_custom_call.1} parent=35 // pred_region
          %s763 = smul.u32 2, %s23
          %s765 = ssub.s32 32, 32
          %766 = vsyncadd %s756, %s765
          %s767 = smul.addr %s22, 2
          %s768 = sadd.s32 %s763, %s767
          %s769 = smul.addr %s768, 16
          %s770 = scalar_lea.hbm %s4, %s769
          %s772 = sshll.u32 %s759, 4
          %s773 = int_to_ptr.vmem [resolvable:$true] %s772
          %775 = dma.vmem_to_hbm [thread:$0]  %s773, 32, %s770, %s756
        $region40: #{tpu_custom_call.1} parent=35 // pred_fallthru
          _
      $region36: #{tpu_custom_call.1} parent=5 // pred_fallthru
        _
      %p776 = scmp.le.s32.totalorder 2, %s13
      // Predicated region
      $region41: #{tpu_custom_call.1} parent=5 // pred_check
        %p777 = pneg %p776
      $region42: #{tpu_custom_call.1} parent=5 // pred_check_branch
        %779 = sbr.rel (%p777) target = $region44
      $region43: #{tpu_custom_call.1} parent=5 // pred_region
        %s780 = ssub.s32 %s13, 2
        // Predicated region
        $region45: #{tpu_custom_call.1} parent=43 // pred_check
          %p781 = pneg %p152
        $region46: #{tpu_custom_call.1} parent=43 // pred_check_branch
          %783 = sbr.rel (%p781) target = $region48
        $region47: #{tpu_custom_call.1} parent=43 // pred_region
          %s784 = sand.u32 %s137, 1
          %s785 = scalar_lea.sflag [#allocation3], %s784
          %s786 = sand.u32 %s137, 1
          %s787 = smul.addr %s786, 2
          %s788 = scalar_lea.vmem [#allocation2], %s787
          %789 = dma.done %s785, 32
        $region48: #{tpu_custom_call.1} parent=43 // pred_fallthru
          _
      $region44: #{tpu_custom_call.1} parent=5 // pred_fallthru
        _
    $region6: #{tpu_custom_call.1} parent=1 // loop_footer
      %s17 = sadd.s32 1, %s13
    $region7: #{tpu_custom_call.1} parent=1 // loop_footer_branch
      %12 = sbr.rel target = $region3
    $region8: #{tpu_custom_call.1} parent=1 // loop_exit
      _
    %790 = vsyncpa [#allocation3], 1
    %s791 = scalar_lea.sflag [#allocation3], 1
    %792 = vsyncpa %s791, 1

</llo_original>
